<compile_context>
chip_gen: v5e
topology: v5e:2x2
jax: 0.10.0
libtpu: 0.0.40
codegen_flags: <defaults>
</compile_context>

<pallas_src>
import numpy as np
import jax
import jax.numpy as jnp
from jax.experimental import pallas as pl
from jax.experimental.pallas import tpu as pltpu


def _adaptive_pool_matrix(in_size: int, out_size: int) -> np.ndarray:
    """Exact torch adaptive_avg_pool1d averaging matrix, shape (out, in)."""
    P = np.zeros((out_size, in_size), dtype=np.float32)
    for i in range(out_size):
        start = (i * in_size) // out_size
        end = -((-(i + 1) * in_size) // out_size)  # ceil((i+1)*in/out)
        P[i, start:end] = 1.0 / float(end - start)
    return P


def _make_kernel(num_levels: int, Cs, OHW: int):
    """Kernel over refs: x_0..x_{L-1} (TB, C_l, HW_l), kT_0..kT_{L-1} (HW_l, OHW), out."""
    c_off = np.cumsum([0] + list(Cs)).tolist()

    def kernel(*refs):
        x_refs = refs[:num_levels]
        k_refs = refs[num_levels:2 * num_levels]
        o_ref = refs[2 * num_levels]
        for l in range(num_levels):
            x = x_refs[l][...]                      # (TB, C_l, HW_l)  NCHW-native slab
            kT = k_refs[l][...]                     # (HW_l, OHW)      fused kron pool matrix^T
            tb, c, hw = x.shape
            # Stack batch rows so the single MXU matmul has M = TB*C_l rows.
            y = jnp.dot(x.reshape(tb * c, hw), kT,
                        preferred_element_type=jnp.float32)
            # Per-level direct store into the channel-concatenated, channels-first output.
            o_ref[:, c_off[l]:c_off[l + 1], :] = y.reshape(tb, c, OHW).astype(o_ref.dtype)

    return kernel


def _choose_batch_tile(B, Cs, HWs, OHW, in_bytes, out_bytes,
                       target_rows=128, vmem_budget=24 * 1024 * 1024):
    """Largest TB dividing B s.t. (a) >=2 grid steps when B>=2 (keeps pipelining alive),
    (b) double-buffered per-step VMEM fits the budget, (c) stop once TB*max(C) fills MXU rows."""
    best = 1
    max_c = max(Cs)
    for tb in range(1, B + 1):
        if B % tb:
            continue
        steps = B // tb
        if B >= 2 and steps < 2:
            continue
        vmem = (2 * sum(tb * c * hw for c, hw in zip(Cs, HWs)) * in_bytes  # dbl-buf inputs
                + sum(hw * OHW for hw in HWs) * 4                          # resident K^T (f32 worst case)
                + 2 * tb * sum(Cs) * OHW * out_bytes)                      # dbl-buf output
        if vmem > vmem_budget:
            continue
        best = tb
        if tb * max_c >= target_rows:
            break
    return best


def pyramid_pool_agg(inputs, stride=2):
    """Pallas implementation of PyramidPoolAgg.forward (inputs: list of NCHW arrays)."""
    B, _, Hl, Wl = inputs[-1].shape
    OH = (Hl - 1) // stride + 1
    OW = (Wl - 1) // stride + 1
    OHW = OH * OW

    num_levels = len(inputs)
    Cs = [int(x.shape[1]) for x in inputs]
    HWs = [int(x.shape[2]) * int(x.shape[3]) for x in inputs]
    sum_C = int(sum(Cs))
    out_dtype = jnp.result_type(*[x.dtype for x in inputs])
    in_bytes = max(jnp.dtype(x.dtype).itemsize for x in inputs)
    out_bytes = jnp.dtype(out_dtype).itemsize

    # bf16 fast path: keep K in bf16 when every activation is bf16 (f32 accumulation kept).
    all_bf16 = all(x.dtype == jnp.bfloat16 for x in inputs)
    k_dtype = jnp.bfloat16 if all_bf16 else jnp.float32

    TB = _choose_batch_tile(B, Cs, HWs, OHW, in_bytes, out_bytes)
    grid = (B // TB,)
    # TODO(synk): for B == 1 there is only one grid step, so BlockSpec pipelining cannot
    # overlap DMA with compute; a second grid axis (channel tiles of the largest level)
    # would restore double-buffering for that corner case.

    xs = []        # NCHW-native flattened-spatial views: (B, C_l, H_l*W_l)  (free reshape)
    kts = []       # fused kron pooling matrices, transposed: (H_l*W_l, OH*OW)
    x_specs = []
    k_specs = []
    for x in inputs:
        b, c, h, w = x.shape
        assert b == B, "all pyramid levels must share the batch dimension"
        xs.append(x.reshape(b, c, h * w))
        K = np.kron(_adaptive_pool_matrix(h, OH), _adaptive_pool_matrix(w, OW))
        kts.append(jnp.asarray(K.T, dtype=k_dtype))
        # Block = TB images' full level; last two dims == full array dims, so the
        # (8,128) divisibility rule is satisfied via the full-dim exemption.
        x_specs.append(pl.BlockSpec((TB, c, h * w), lambda i: (i, 0, 0)))
        # Constant block index -> pipeline keeps K^T resident (no per-step re-DMA).
        k_specs.append(pl.BlockSpec((h * w, OHW), lambda i: (0, 0)))

    flops = 2 * B * OHW * sum(hw * c for hw, c in zip(HWs, Cs))
    bytes_accessed = (sum(B * c * hw * jnp.dtype(x.dtype).itemsize
                          for x, c, hw in zip(inputs, Cs, HWs))
                      + sum(hw * OHW * jnp.dtype(k_dtype).itemsize for hw in HWs)
                      + B * sum_C * OHW * out_bytes)
    cost = pl.CostEstimate(flops=flops, transcendentals=0, bytes_accessed=bytes_accessed)

    out = pl.pallas_call(
        _make_kernel(num_levels, Cs, OHW),
        out_shape=jax.ShapeDtypeStruct((B, sum_C, OHW), out_dtype),
        grid=grid,
        in_specs=x_specs + k_specs,
        out_specs=pl.BlockSpec((TB, sum_C, OHW), lambda i: (i, 0, 0)),
        compiler_params=pltpu.CompilerParams(
            dimension_semantics=("parallel",),
        ),
        cost_estimate=cost,
    )(*xs, *kts)

    # (B, sum_C, OH*OW) -> (B, sum_C, OH, OW): a free reshape, no transpose needed.
    return out.reshape(B, sum_C, OH, OW)


# ----------------------------- validation helpers -----------------------------

def _reference_pool(x, out_hw):
    """Pure-JAX reference (same exact averaging matrices) for validation."""
    B, C, H, W = x.shape
    OH, OW = out_hw
    Ph = jnp.asarray(_adaptive_pool_matrix(H, OH))
    Pw = jnp.asarray(_adaptive_pool_matrix(W, OW))
    return jnp.einsum("oh,bchw,pw->bcop", Ph, x.astype(jnp.float32), Pw)


def _reference_agg(inputs, stride=2):
    B, C, H, W = inputs[-1].shape
    OH = (H - 1) // stride + 1
    OW = (W - 1) // stride + 1
    return jnp.concatenate([_reference_pool(x, (OH, OW)) for x in inputs], axis=1)


if __name__ == "__main__":
    key = jax.random.PRNGKey(0)
    k1, k2, k3 = jax.random.split(key, 3)

    # Small feature pyramid (NCHW), last level is the smallest.
    inputs = [
        jax.random.normal(k1, (2, 4, 16, 16), dtype=jnp.float32),
        jax.random.normal(k2, (2, 8, 8, 8), dtype=jnp.float32),
        jax.random.normal(k3, (2, 16, 4, 4), dtype=jnp.float32),
    ]

    out = pyramid_pool_agg(inputs, stride=2)
    out = jax.block_until_ready(out)

    ref = jax.block_until_ready(_reference_agg(inputs, stride=2))
    assert out.shape == (2, 4 + 8 + 16, 2, 2), out.shape
    np.testing.assert_allclose(np.asarray(out), np.asarray(ref), rtol=1e-5, atol=1e-5)

    print("KERNEL_OK")
</pallas_src>

<mosaic_0001>
module attributes {stable_mosaic.version = 11 : i64} {
  func.func @kernel(%arg0: i32, %arg1: memref<1x4x256xf32, #tpu.memory_space<vmem>>, %arg2: memref<1x8x64xf32, #tpu.memory_space<vmem>>, %arg3: memref<1x16x16xf32, #tpu.memory_space<vmem>>, %arg4: memref<256x4xf32, #tpu.memory_space<vmem>>, %arg5: memref<64x4xf32, #tpu.memory_space<vmem>>, %arg6: memref<16x4xf32, #tpu.memory_space<vmem>>, %arg7: memref<1x28x4xf32, #tpu.memory_space<vmem>>) attributes {dimension_semantics = [#tpu.dimension_semantics<parallel>], iteration_bounds = array<i64: 2>, scalar_prefetch = 0 : i64, scratch_operands = 0 : i64, tpu.core_type = #tpu.core_type<tc>, window_params = [{transform_indices = @transform_0, window_bounds = array<i64: 1, 4, 256>}, {transform_indices = @transform_1, window_bounds = array<i64: 1, 8, 64>}, {transform_indices = @transform_2, window_bounds = array<i64: 1, 16, 16>}, {pipeline_mode = #tpu.pipeline_mode<synchronous>, transform_indices = @transform_3, window_bounds = array<i64: 256, 4>}, {pipeline_mode = #tpu.pipeline_mode<synchronous>, transform_indices = @transform_4, window_bounds = array<i64: 64, 4>}, {pipeline_mode = #tpu.pipeline_mode<synchronous>, transform_indices = @transform_5, window_bounds = array<i64: 16, 4>}, {transform_indices = @transform_6, window_bounds = array<i64: 1, 28, 4>}]} {
    %c0 = arith.constant 0 : index
    %c0_0 = arith.constant 0 : index
    %c0_1 = arith.constant 0 : index
    %0 = vector.load %arg1[%c0, %c0_0, %c0_1] : memref<1x4x256xf32, #tpu.memory_space<vmem>>, vector<1x4x256xf32>
    %c0_2 = arith.constant 0 : index
    %c0_3 = arith.constant 0 : index
    %1 = vector.load %arg4[%c0_2, %c0_3] : memref<256x4xf32, #tpu.memory_space<vmem>>, vector<256x4xf32>
    %2 = vector.shape_cast %0 : vector<1x4x256xf32> to vector<4x256xf32>
    %cst = arith.constant dense<0.000000e+00> : vector<4x4xf32>
    %3 = tpu.matmul %2, %1, %cst {dimension_numbers = #tpu.dot_dimension_numbers<[1], [0], [0], [1], [0, 0, 1, 1], [], []>} : vector<4x256xf32>, vector<256x4xf32>, vector<4x4xf32> -> vector<4x4xf32>
    %4 = vector.shape_cast %3 : vector<4x4xf32> to vector<1x4x4xf32>
    %c0_4 = arith.constant 0 : index
    %c0_5 = arith.constant 0 : index
    %c0_6 = arith.constant 0 : index
    %5 = vector.load %arg7[%c0_4, %c0_5, %c0_6] : memref<1x28x4xf32, #tpu.memory_space<vmem>>, vector<1x4x4xf32>
    tpu.vector_store %arg7[%c0_4, %c0_5, %c0_6], %4 {strides = array<i32>} : memref<1x28x4xf32, #tpu.memory_space<vmem>>, vector<1x4x4xf32>,
    %c0_7 = arith.constant 0 : index
    %c0_8 = arith.constant 0 : index
    %c0_9 = arith.constant 0 : index
    %6 = vector.load %arg2[%c0_7, %c0_8, %c0_9] : memref<1x8x64xf32, #tpu.memory_space<vmem>>, vector<1x8x64xf32>
    %c0_10 = arith.constant 0 : index
    %c0_11 = arith.constant 0 : index
    %7 = vector.load %arg5[%c0_10, %c0_11] : memref<64x4xf32, #tpu.memory_space<vmem>>, vector<64x4xf32>
    %8 = vector.shape_cast %6 : vector<1x8x64xf32> to vector<8x64xf32>
    %cst_12 = arith.constant dense<0.000000e+00> : vector<8x4xf32>
    %9 = tpu.matmul %8, %7, %cst_12 {dimension_numbers = #tpu.dot_dimension_numbers<[1], [0], [0], [1], [0, 0, 1, 1], [], []>} : vector<8x64xf32>, vector<64x4xf32>, vector<8x4xf32> -> vector<8x4xf32>
    %10 = vector.shape_cast %9 : vector<8x4xf32> to vector<1x8x4xf32>
    %c0_13 = arith.constant 0 : index
    %c4 = arith.constant 4 : index
    %c0_14 = arith.constant 0 : index
    %11 = vector.load %arg7[%c0_13, %c4, %c0_14] : memref<1x28x4xf32, #tpu.memory_space<vmem>>, vector<1x8x4xf32>
    tpu.vector_store %arg7[%c0_13, %c4, %c0_14], %10 {strides = array<i32>} : memref<1x28x4xf32, #tpu.memory_space<vmem>>, vector<1x8x4xf32>,
    %c0_15 = arith.constant 0 : index
    %c0_16 = arith.constant 0 : index
    %c0_17 = arith.constant 0 : index
    %12 = vector.load %arg3[%c0_15, %c0_16, %c0_17] : memref<1x16x16xf32, #tpu.memory_space<vmem>>, vector<1x16x16xf32>
    %c0_18 = arith.constant 0 : index
    %c0_19 = arith.constant 0 : index
    %13 = vector.load %arg6[%c0_18, %c0_19] : memref<16x4xf32, #tpu.memory_space<vmem>>, vector<16x4xf32>
    %14 = vector.shape_cast %12 : vector<1x16x16xf32> to vector<16x16xf32>
    %cst_20 = arith.constant dense<0.000000e+00> : vector<16x4xf32>
    %15 = tpu.matmul %14, %13, %cst_20 {dimension_numbers = #tpu.dot_dimension_numbers<[1], [0], [0], [1], [0, 0, 1, 1], [], []>} : vector<16x16xf32>, vector<16x4xf32>, vector<16x4xf32> -> vector<16x4xf32>
    %16 = vector.shape_cast %15 : vector<16x4xf32> to vector<1x16x4xf32>
    %c0_21 = arith.constant 0 : index
    %c12 = arith.constant 12 : index
    %c0_22 = arith.constant 0 : index
    %17 = vector.load %arg7[%c0_21, %c12, %c0_22] : memref<1x28x4xf32, #tpu.memory_space<vmem>>, vector<1x16x4xf32>
    tpu.vector_store %arg7[%c0_21, %c12, %c0_22], %16 {strides = array<i32>} : memref<1x28x4xf32, #tpu.memory_space<vmem>>, vector<1x16x4xf32>,
    return
  }
  func.func @transform_0(%arg0: i32) -> (i32, i32, i32) {
    %c0_i32 = arith.constant 0 : i32
    %c0_i32_0 = arith.constant 0 : i32
    %c0_i32_1 = arith.constant 0 : i32
    return %arg0, %c0_i32, %c0_i32_0 : i32, i32, i32
  }
  func.func @transform_1(%arg0: i32) -> (i32, i32, i32) {
    %c0_i32 = arith.constant 0 : i32
    %c0_i32_0 = arith.constant 0 : i32
    %c0_i32_1 = arith.constant 0 : i32
    return %arg0, %c0_i32, %c0_i32_0 : i32, i32, i32
  }
  func.func @transform_2(%arg0: i32) -> (i32, i32, i32) {
    %c0_i32 = arith.constant 0 : i32
    %c0_i32_0 = arith.constant 0 : i32
    %c0_i32_1 = arith.constant 0 : i32
    return %arg0, %c0_i32, %c0_i32_0 : i32, i32, i32
  }
  func.func @transform_3(%arg0: i32) -> (i32, i32) {
    %c0_i32 = arith.constant 0 : i32
    %c0_i32_0 = arith.constant 0 : i32
    %c0_i32_1 = arith.constant 0 : i32
    return %c0_i32, %c0_i32_0 : i32, i32
  }
  func.func @transform_4(%arg0: i32) -> (i32, i32) {
    %c0_i32 = arith.constant 0 : i32
    %c0_i32_0 = arith.constant 0 : i32
    %c0_i32_1 = arith.constant 0 : i32
    return %c0_i32, %c0_i32_0 : i32, i32
  }
  func.func @transform_5(%arg0: i32) -> (i32, i32) {
    %c0_i32 = arith.constant 0 : i32
    %c0_i32_0 = arith.constant 0 : i32
    %c0_i32_1 = arith.constant 0 : i32
    return %c0_i32, %c0_i32_0 : i32, i32
  }
  func.func @transform_6(%arg0: i32) -> (i32, i32, i32) {
    %c0_i32 = arith.constant 0 : i32
    %c0_i32_0 = arith.constant 0 : i32
    %c0_i32_1 = arith.constant 0 : i32
    return %arg0, %c0_i32, %c0_i32_0 : i32, i32, i32
  }
}

</mosaic_0001>

<llo_original>
// kernel: tpu_custom_call.1
$region0: #{tpu_custom_call.1}
  #allocation0 [shape = 'u32[]', space=smem, size = 0x4, offset = 0x4, fixed_abs, tag = 'smem constant byte address 0x4 - core index']
  #allocation1 [shape = 'u32[72,128]{1,0:T(1,128)}', space=vmem, size = 0x9000, scoped, tag = 'internal scratch']
  %s0 = inlined_call_operand.vmem [shape: f32[2,4,256], index: 0, kind: input, shape index: {}]
  %s1 = inlined_call_operand.vmem [shape: f32[2,8,64], index: 1, kind: input, shape index: {}]
  %s2 = inlined_call_operand.vmem [shape: f32[2,16,16], index: 2, kind: input, shape index: {}]
  %s3 = inlined_call_operand.vmem [shape: f32[256,4], index: 3, kind: input, shape index: {}]
  %s4 = inlined_call_operand.vmem [shape: f32[64,4], index: 4, kind: input, shape index: {}]
  %s5 = inlined_call_operand.vmem [shape: f32[16,4], index: 5, kind: input, shape index: {}]
  %s6 = inlined_call_operand.vmem [shape: f32[2,28,4], index: 6, kind: output, shape index: {}]
  %s7 = sld [smem:[#allocation0]]
  $region57: #{tpu_custom_call.1} parent=0
    _
  %s9 = ssub.s32 1, %s7
  %s10 = scalar_select 0, %s9, %s7
  loop: start=0, step=1, limit=4
  $region2: #{tpu_custom_call.1} parent=0 // loop_pre_header
    _
  $region3: #{tpu_custom_call.1} parent=0 // loop_header
    %s12 = sphi 0, %s16
    %p13 = scmp.ge.s32.totalorder %s12, 4
    %s22 = sphi 0, %s24
    %s25 = sphi 0, %s22
    %s26 = sphi 0, %s25
    %s42 = sphi 0, %s26
    %s48 = sphi 0, %s50
    %s51 = sphi 0, %s48
    %s52 = sphi 0, %s51
    %s68 = sphi 0, %s52
    %s74 = sphi 0, %s76
    %s77 = sphi 0, %s74
    %s78 = sphi 0, %s77
    %s94 = sphi 0, %s78
    %s98 = sphi 0, %s98
    %s100 = sphi 0, %s98
    %s101 = sphi 0, %s100
    %s115 = sphi 0, %s101
    %s119 = sphi 0, %s119
    %s121 = sphi 0, %s119
    %s122 = sphi 0, %s121
    %s136 = sphi 0, %s122
    %s140 = sphi 0, %s140
    %s142 = sphi 0, %s140
    %s143 = sphi 0, %s142
    %s157 = sphi 0, %s143
    %s163 = sphi 0, %s165
    %s166 = sphi 0, %s163
    %s167 = sphi 0, %s166
    %s183 = sphi 0, %s167
  $region4: #{tpu_custom_call.1} parent=0 // loop_header_branch
    %15 = sbr.rel (%p13) target = $region8
  $region5: #{tpu_custom_call.1} parent=0 // loop_body
    %s17 = ssub.s32 %s12, 1
    %s18 = ssub.s32 %s12, 2
    %s19 = sadd.s32 %s12, 1
    %s20 = ssub.s32 %s12, %s19
    %p21 = scmp.eq.s32.totalorder %s20, 0
    %s23 = sadd.s32 %s22, 1
    %s24 = scalar_select %p21, %s22, %s23
    %p27 = pneg %p21
    %p28 = scmp.eq.s32.totalorder %s12, 1
    %p29 = por %p27, %p28
    %p30 = scmp.ne.s32.totalorder %s22, %s25
    %p31 = scmp.eq.s32.totalorder %s12, 0
    %p32 = por %p30, %p31
    %p33 = scmp.ne.s32.totalorder %s22, %s25
    %p34 = scmp.eq.s32.totalorder %s17, 1
    %p35 = por %p33, %p34
    %p36 = scmp.ne.s32.totalorder %s25, %s26
    %p37 = scmp.eq.s32.totalorder %s17, 0
    %p38 = por %p36, %p37
    %p39 = scmp.ne.s32.totalorder %s25, %s26
    %p40 = scmp.eq.s32.totalorder %s18, 1
    %p41 = por %p39, %p40
    %p43 = scmp.ne.s32.totalorder %s26, %s42
    %p44 = scmp.eq.s32.totalorder %s18, 0
    %p45 = por %p43, %p44
    %s46 = ssub.s32 %s12, %s19
    %p47 = scmp.eq.s32.totalorder %s46, 0
    %s49 = sadd.s32 %s48, 1
    %s50 = scalar_select %p47, %s48, %s49
    %p53 = pneg %p47
    %p54 = scmp.eq.s32.totalorder %s12, 1
    %p55 = por %p53, %p54
    %p56 = scmp.ne.s32.totalorder %s48, %s51
    %p57 = scmp.eq.s32.totalorder %s12, 0
    %p58 = por %p56, %p57
    %p59 = scmp.ne.s32.totalorder %s48, %s51
    %p60 = scmp.eq.s32.totalorder %s17, 1
    %p61 = por %p59, %p60
    %p62 = scmp.ne.s32.totalorder %s51, %s52
    %p63 = scmp.eq.s32.totalorder %s17, 0
    %p64 = por %p62, %p63
    %p65 = scmp.ne.s32.totalorder %s51, %s52
    %p66 = scmp.eq.s32.totalorder %s18, 1
    %p67 = por %p65, %p66
    %p69 = scmp.ne.s32.totalorder %s52, %s68
    %p70 = scmp.eq.s32.totalorder %s18, 0
    %p71 = por %p69, %p70
    %s72 = ssub.s32 %s12, %s19
    %p73 = scmp.eq.s32.totalorder %s72, 0
    %s75 = sadd.s32 %s74, 1
    %s76 = scalar_select %p73, %s74, %s75
    %p79 = pneg %p73
    %p80 = scmp.eq.s32.totalorder %s12, 1
    %p81 = por %p79, %p80
    %p82 = scmp.ne.s32.totalorder %s74, %s77
    %p83 = scmp.eq.s32.totalorder %s12, 0
    %p84 = por %p82, %p83
    %p85 = scmp.ne.s32.totalorder %s74, %s77
    %p86 = scmp.eq.s32.totalorder %s17, 1
    %p87 = por %p85, %p86
    %p88 = scmp.ne.s32.totalorder %s77, %s78
    %p89 = scmp.eq.s32.totalorder %s17, 0
    %p90 = por %p88, %p89
    %p91 = scmp.ne.s32.totalorder %s77, %s78
    %p92 = scmp.eq.s32.totalorder %s18, 1
    %p93 = por %p91, %p92
    %p95 = scmp.ne.s32.totalorder %s78, %s94
    %p96 = scmp.eq.s32.totalorder %s18, 0
    %p97 = por %p95, %p96
    %s99 = sadd.s32 %s98, 1
    %p102 = scmp.eq.s32.totalorder %s12, 1
    %p103 = scmp.ne.s32.totalorder %s98, %s100
    %p104 = scmp.eq.s32.totalorder %s12, 0
    %p105 = por %p103, %p104
    %p106 = scmp.ne.s32.totalorder %s98, %s100
    %p107 = scmp.eq.s32.totalorder %s17, 1
    %p108 = por %p106, %p107
    %p109 = scmp.ne.s32.totalorder %s100, %s101
    %p110 = scmp.eq.s32.totalorder %s17, 0
    %p111 = por %p109, %p110
    %p112 = scmp.ne.s32.totalorder %s100, %s101
    %p113 = scmp.eq.s32.totalorder %s18, 1
    %p114 = por %p112, %p113
    %p116 = scmp.ne.s32.totalorder %s101, %s115
    %p117 = scmp.eq.s32.totalorder %s18, 0
    %p118 = por %p116, %p117
    %s120 = sadd.s32 %s119, 1
    %p123 = scmp.eq.s32.totalorder %s12, 1
    %p124 = scmp.ne.s32.totalorder %s119, %s121
    %p125 = scmp.eq.s32.totalorder %s12, 0
    %p126 = por %p124, %p125
    %p127 = scmp.ne.s32.totalorder %s119, %s121
    %p128 = scmp.eq.s32.totalorder %s17, 1
    %p129 = por %p127, %p128
    %p130 = scmp.ne.s32.totalorder %s121, %s122
    %p131 = scmp.eq.s32.totalorder %s17, 0
    %p132 = por %p130, %p131
    %p133 = scmp.ne.s32.totalorder %s121, %s122
    %p134 = scmp.eq.s32.totalorder %s18, 1
    %p135 = por %p133, %p134
    %p137 = scmp.ne.s32.totalorder %s122, %s136
    %p138 = scmp.eq.s32.totalorder %s18, 0
    %p139 = por %p137, %p138
    %s141 = sadd.s32 %s140, 1
    %p144 = scmp.eq.s32.totalorder %s12, 1
    %p145 = scmp.ne.s32.totalorder %s140, %s142
    %p146 = scmp.eq.s32.totalorder %s12, 0
    %p147 = por %p145, %p146
    %p148 = scmp.ne.s32.totalorder %s140, %s142
    %p149 = scmp.eq.s32.totalorder %s17, 1
    %p150 = por %p148, %p149
    %p151 = scmp.ne.s32.totalorder %s142, %s143
    %p152 = scmp.eq.s32.totalorder %s17, 0
    %p153 = por %p151, %p152
    %p154 = scmp.ne.s32.totalorder %s142, %s143
    %p155 = scmp.eq.s32.totalorder %s18, 1
    %p156 = por %p154, %p155
    %p158 = scmp.ne.s32.totalorder %s143, %s157
    %p159 = scmp.eq.s32.totalorder %s18, 0
    %p160 = por %p158, %p159
    %s161 = ssub.s32 %s12, %s19
    %p162 = scmp.eq.s32.totalorder %s161, 0
    %s164 = sadd.s32 %s163, 1
    %s165 = scalar_select %p162, %s163, %s164
    %p168 = pneg %p162
    %p169 = scmp.eq.s32.totalorder %s12, 1
    %p170 = por %p168, %p169
    %p171 = scmp.ne.s32.totalorder %s163, %s166
    %p172 = scmp.eq.s32.totalorder %s12, 0
    %p173 = por %p171, %p172
    %p174 = scmp.ne.s32.totalorder %s163, %s166
    %p175 = scmp.eq.s32.totalorder %s17, 1
    %p176 = por %p174, %p175
    %p177 = scmp.ne.s32.totalorder %s166, %s167
    %p178 = scmp.eq.s32.totalorder %s17, 0
    %p179 = por %p177, %p178
    %p180 = scmp.ne.s32.totalorder %s166, %s167
    %p181 = scmp.eq.s32.totalorder %s18, 1
    %p182 = por %p180, %p181
    %p184 = scmp.ne.s32.totalorder %s167, %s183
    %p185 = scmp.eq.s32.totalorder %s18, 0
    %p186 = por %p184, %p185
    %p187 = scmp.le.s32.totalorder 1, %s12
    %p188 = scmp.lt.s32.totalorder %s12, 3
    %p189 = pnand %p187, %p188
    %p190 = pneg %p189
    // Predicated region
    $region9: #{tpu_custom_call.1} parent=5 // pred_check
      _
    $region10: #{tpu_custom_call.1} parent=5 // pred_check_branch
      %192 = sbr.rel (%p189) target = $region12
    $region11: #{tpu_custom_call.1} parent=5 // pred_region
      %s193 = ssub.s32 %s12, 1
      // Predicated region
      $region13: #{tpu_custom_call.1} parent=11 // pred_check
        %p194 = pneg %p111
      $region14: #{tpu_custom_call.1} parent=11 // pred_check_branch
        %196 = sbr.rel (%p194) target = $region16
      $region15: #{tpu_custom_call.1} parent=11 // pred_region
        _
      $region16: #{tpu_custom_call.1} parent=11 // pred_fallthru
        _
      // Predicated region
      $region17: #{tpu_custom_call.1} parent=11 // pred_check
        %p197 = pneg %p132
      $region18: #{tpu_custom_call.1} parent=11 // pred_check_branch
        %199 = sbr.rel (%p197) target = $region20
      $region19: #{tpu_custom_call.1} parent=11 // pred_region
        _
      $region20: #{tpu_custom_call.1} parent=11 // pred_fallthru
        _
      // Predicated region
      $region21: #{tpu_custom_call.1} parent=11 // pred_check
        %p200 = pneg %p153
      $region22: #{tpu_custom_call.1} parent=11 // pred_check_branch
        %202 = sbr.rel (%p200) target = $region24
      $region23: #{tpu_custom_call.1} parent=11 // pred_region
        _
      $region24: #{tpu_custom_call.1} parent=11 // pred_fallthru
        _
    $region12: #{tpu_custom_call.1} parent=5 // pred_fallthru
      _
    %p203 = scmp.lt.s32.totalorder %s12, 2
    // Predicated region
    $region25: #{tpu_custom_call.1} parent=5 // pred_check
      %p204 = pneg %p203
    $region26: #{tpu_custom_call.1} parent=5 // pred_check_branch
      %206 = sbr.rel (%p204) target = $region28
    $region27: #{tpu_custom_call.1} parent=5 // pred_region
      // Predicated region
      $region29: #{tpu_custom_call.1} parent=27 // pred_check
        %p207 = pneg %p32
      $region30: #{tpu_custom_call.1} parent=27 // pred_check_branch
        %209 = sbr.rel (%p207) target = $region32
      $region31: #{tpu_custom_call.1} parent=27 // pred_region
        %p210 = scmp.lt.s32.totalorder %s12, 1
        %s211 = scalar_select %p210, %s12, 1
        %s212 = smul.addr %s211, 2
        %s213 = smul.addr %s212, 4
        %s214 = scalar_lea.vmem %s0, %s213
      $region32: #{tpu_custom_call.1} parent=27 // pred_fallthru
        _
      // Predicated region
      $region33: #{tpu_custom_call.1} parent=27 // pred_check
        %p215 = pneg %p58
      $region34: #{tpu_custom_call.1} parent=27 // pred_check_branch
        %217 = sbr.rel (%p215) target = $region36
      $region35: #{tpu_custom_call.1} parent=27 // pred_region
        %p218 = scmp.lt.s32.totalorder %s12, 1
        %s219 = scalar_select %p218, %s12, 1
        %s220 = smul.addr %s219, 8
        %s221 = scalar_lea.vmem %s1, %s220
      $region36: #{tpu_custom_call.1} parent=27 // pred_fallthru
        _
      // Predicated region
      $region37: #{tpu_custom_call.1} parent=27 // pred_check
        %p222 = pneg %p84
      $region38: #{tpu_custom_call.1} parent=27 // pred_check_branch
        %224 = sbr.rel (%p222) target = $region40
      $region39: #{tpu_custom_call.1} parent=27 // pred_region
        %p225 = scmp.lt.s32.totalorder %s12, 1
        %s226 = scalar_select %p225, %s12, 1
        %s227 = smul.addr %s226, 2
        %s228 = smul.addr %s227, 8
        %s229 = scalar_lea.vmem %s2, %s228
      $region40: #{tpu_custom_call.1} parent=27 // pred_fallthru
        _
    $region28: #{tpu_custom_call.1} parent=5 // pred_fallthru
      _
    %p230 = scmp.le.s32.totalorder 1, %s12
    %p231 = scmp.lt.s32.totalorder %s12, 3
    %p232 = pnand %p230, %p231
    %p233 = pneg %p232
    // Predicated region
    $region41: #{tpu_custom_call.1} parent=5 // pred_check
      _
    $region42: #{tpu_custom_call.1} parent=5 // pred_check_branch
      %235 = sbr.rel (%p232) target = $region44
    $region43: #{tpu_custom_call.1} parent=5 // pred_region
      %s236 = ssub.s32 %s12, 1
      %p237 = scmp.lt.s32.totalorder %s17, 1
      %s238 = scalar_select %p237, %s17, 1
      %s239 = smul.addr %s238, 2
      %s240 = smul.addr %s239, 4
      %s241 = scalar_lea.vmem %s0, %s240
      %p242 = pneg %p38
      %p243 = pneg %p35
      %p244 = scmp.lt.s32.totalorder %s17, 1
      %s245 = scalar_select %p244, %s17, 1
      %s246 = smul.addr %s245, 8
      %s247 = scalar_lea.vmem %s1, %s246
      %p248 = pneg %p64
      %p249 = pneg %p61
      %p250 = scmp.lt.s32.totalorder %s17, 1
      %s251 = scalar_select %p250, %s17, 1
      %s252 = smul.addr %s251, 2
      %s253 = smul.addr %s252, 8
      %s254 = scalar_lea.vmem %s2, %s253
      %p255 = pneg %p90
      %p256 = pneg %p87
      %p257 = pneg %p111
      %p258 = pneg %p108
      %p259 = pneg %p132
      %p260 = pneg %p129
      %p261 = pneg %p153
      %p262 = pneg %p150
      %p263 = pneg %p179
      %p264 = pneg %p176
      %p265 = scmp.lt.s32.totalorder %s17, 1
      %s266 = scalar_select %p265, %s17, 1
      %s267 = smul.addr %s266, 4
      %s268 = smul.addr %s267, 8
      %s269 = scalar_lea.vmem %s6, %s268
      %p270 = scmp.lt.s32.totalorder %s17, 1
      %s271 = scalar_select %p270, %s17, 1
      %s272 = smul.addr %s271, 2
      %s273 = smul.addr %s272, 4
      %s274 = scalar_lea.vmem %s0, %s273
      %p275 = scmp.lt.s32.totalorder %s17, 1
      %s276 = scalar_select %p275, %s17, 1
      %s277 = smul.addr %s276, 8
      %s278 = scalar_lea.vmem %s1, %s277
      %p279 = scmp.lt.s32.totalorder %s17, 1
      %s280 = scalar_select %p279, %s17, 1
      %s281 = smul.addr %s280, 2
      %s282 = smul.addr %s281, 8
      %s283 = scalar_lea.vmem %s2, %s282
      %p284 = scmp.lt.s32.totalorder %s17, 1
      %s285 = scalar_select %p284, %s17, 1
      %s286 = smul.addr %s285, 4
      %s287 = smul.addr %s286, 8
      %s288 = scalar_lea.vmem %s6, %s287
      %v289 = vld [vmem:[%s274] sm:$0xff]
      %v290 = vld [vmem:[%s3] sm:$0xff]
      %v291 = vld [vmem:[%s3 + $0x8] sm:$0xff]
      %v292 = vld [vmem:[%s3 + $0x10] sm:$0xff]
      %v293 = vld [vmem:[%s3 + $0x18] sm:$0xff]
      %v294 = vld [vmem:[%s3 + $0x20] sm:$0xff]
      %v295 = vld [vmem:[%s3 + $0x28] sm:$0xff]
      %v296 = vld [vmem:[%s3 + $0x30] sm:$0xff]
      %v297 = vld [vmem:[%s3 + $0x38] sm:$0xff]
      %v298 = vld [vmem:[%s3 + $0x40] sm:$0xff]
      %v299 = vld [vmem:[%s3 + $0x48] sm:$0xff]
      %v300 = vld [vmem:[%s3 + $0x50] sm:$0xff]
      %v301 = vld [vmem:[%s3 + $0x58] sm:$0xff]
      %v302 = vld [vmem:[%s3 + $0x60] sm:$0xff]
      %v303 = vld [vmem:[%s3 + $0x68] sm:$0xff]
      %v304 = vld [vmem:[%s3 + $0x70] sm:$0xff]
      %v305 = vld [vmem:[%s3 + $0x78] sm:$0xff]
      %v306 = vld [vmem:[%s3 + $0x80] sm:$0xff]
      %v307 = vld [vmem:[%s3 + $0x88] sm:$0xff]
      %v308 = vld [vmem:[%s3 + $0x90] sm:$0xff]
      %v309 = vld [vmem:[%s3 + $0x98] sm:$0xff]
      %v310 = vld [vmem:[%s3 + $0xa0] sm:$0xff]
      %v311 = vld [vmem:[%s3 + $0xa8] sm:$0xff]
      %v312 = vld [vmem:[%s3 + $0xb0] sm:$0xff]
      %v313 = vld [vmem:[%s3 + $0xb8] sm:$0xff]
      %v314 = vld [vmem:[%s3 + $0xc0] sm:$0xff]
      %v315 = vld [vmem:[%s3 + $0xc8] sm:$0xff]
      %v316 = vld [vmem:[%s3 + $0xd0] sm:$0xff]
      %v317 = vld [vmem:[%s3 + $0xd8] sm:$0xff]
      %v318 = vld [vmem:[%s3 + $0xe0] sm:$0xff]
      %v319 = vld [vmem:[%s3 + $0xe8] sm:$0xff]
      %v320 = vld [vmem:[%s3 + $0xf0] sm:$0xff]
      %v321 = vld [vmem:[%s3 + $0xf8] sm:$0xff]
      %323 = vst [vmem:[#allocation1] ss:$2 sm:$0xff] %v289
      %v324 = vld.sshfl [vmem:[#allocation1] sm:$0xff pattern:$0x75316420]
      %v325 = vld.sshfl [vmem:[#allocation1 + $0x8] sm:$0xff pattern:$0x75316420]
      %328 = vmatpush.msra.mxu0 %v305
      %329 = vmatpush.msra.mxu0 %v304
      %330 = vmatpush.msra.mxu0 %v303
      %331 = vmatpush.msra.mxu0 %v302
      %332 = vmatpush.msra.mxu0 %v301
      %333 = vmatpush.msra.mxu0 %v300
      %334 = vmatpush.msra.mxu0 %v299
      %335 = vmatpush.msra.mxu0 %v298
      %336 = vmatpush.msra.mxu0 %v297
      %337 = vmatpush.msra.mxu0 %v296
      %338 = vmatpush.msra.mxu0 %v295
      %339 = vmatpush.msra.mxu0 %v294
      %340 = vmatpush.msra.mxu0 %v293
      %341 = vmatpush.msra.mxu0 %v292
      %342 = vmatpush.msra.mxu0 %v291
      %343 = vmatpush.msra.mxu0 %v290
      %344 = vmatmul.f32.gmra.mxu0 %v324
      %v345 = vpop.f32.mrf.mxu0
      %v346 = vadd.f32 0.0, %v345
      %347 = vdwg.mxu0
      %348 = vmatpush.msra.mxu0 %v321
      %349 = vmatpush.msra.mxu0 %v320
      %350 = vmatpush.msra.mxu0 %v319
      %351 = vmatpush.msra.mxu0 %v318
      %352 = vmatpush.msra.mxu0 %v317
      %353 = vmatpush.msra.mxu0 %v316
      %354 = vmatpush.msra.mxu0 %v315
      %355 = vmatpush.msra.mxu0 %v314
      %356 = vmatpush.msra.mxu0 %v313
      %357 = vmatpush.msra.mxu0 %v312
      %358 = vmatpush.msra.mxu0 %v311
      %359 = vmatpush.msra.mxu0 %v310
      %360 = vmatpush.msra.mxu0 %v309
      %361 = vmatpush.msra.mxu0 %v308
      %362 = vmatpush.msra.mxu0 %v307
      %363 = vmatpush.msra.mxu0 %v306
      %364 = vmatmul.f32.gmra.mxu0 %v325
      %v365 = vpop.f32.mrf.mxu0
      %v366 = vadd.f32 %v346, %v365
      %367 = vdwg.mxu0
      %vm368 = vcmask 27648
      %369 = vst.msk [vmem:[%s288] sm:$0xf] %vm368, %v366
      %v370 = vld [vmem:[%s278] sm:$0xff]
      %v371 = vld [vmem:[%s4] sm:$0xff]
      %v372 = vld [vmem:[%s4 + $0x8] sm:$0xff]
      %v373 = vld [vmem:[%s4 + $0x10] sm:$0xff]
      %v374 = vld [vmem:[%s4 + $0x18] sm:$0xff]
      %v375 = vld [vmem:[%s4 + $0x20] sm:$0xff]
      %v376 = vld [vmem:[%s4 + $0x28] sm:$0xff]
      %v377 = vld [vmem:[%s4 + $0x30] sm:$0xff]
      %v378 = vld [vmem:[%s4 + $0x38] sm:$0xff]
      %vm379 = vcmask 523264
      %v381 = vsel %vm379, %v370, 0
      %383 = vmatpush.msra.mxu0 0.0
      %384 = vmatpush.msra.mxu0 0.0
      %385 = vmatpush.msra.mxu0 0.0
      %386 = vmatpush.msra.mxu0 0.0
      %387 = vmatpush.msra.mxu0 0.0
      %388 = vmatpush.msra.mxu0 0.0
      %389 = vmatpush.msra.mxu0 0.0
      %390 = vmatpush.msra.mxu0 0.0
      %391 = vmatpush.msra.mxu0 %v378
      %392 = vmatpush.msra.mxu0 %v377
      %393 = vmatpush.msra.mxu0 %v376
      %394 = vmatpush.msra.mxu0 %v375
      %395 = vmatpush.msra.mxu0 %v374
      %396 = vmatpush.msra.mxu0 %v373
      %397 = vmatpush.msra.mxu0 %v372
      %398 = vmatpush.msra.mxu0 %v371
      %399 = vmatmul.f32.gmra.mxu0 %v381
      %v400 = vpop.f32.mrf.mxu0
      %v401 = vadd.f32 0.0, %v400
      %402 = vdwg.mxu0
      %vm403 = vcmask 31744
      %404 = vst.msk [vmem:[%s288 + $0x4] sm:$0xff] %vm403, %v401
      %v405 = vld [vmem:[%s283] sm:$0xff]
      %v406 = vld [vmem:[%s283 + $0x8] sm:$0xff]
      %v407 = vld [vmem:[%s5] sm:$0xff]
      %v408 = vld [vmem:[%s5 + $0x8] sm:$0xff]
      %vm409 = vcmask 130048
      %v411 = vsel %vm409, %v405, 0
      %v414 = vsel %vm409, %v406, 0
      %416 = vmatpush.msra.mxu0 0.0
      %417 = vmatpush.msra.mxu0 0.0
      %418 = vmatpush.msra.mxu0 0.0
      %419 = vmatpush.msra.mxu0 0.0
      %420 = vmatpush.msra.mxu0 0.0
      %421 = vmatpush.msra.mxu0 0.0
      %422 = vmatpush.msra.mxu0 0.0
      %423 = vmatpush.msra.mxu0 0.0
      %424 = vmatpush.msra.mxu0 0.0
      %425 = vmatpush.msra.mxu0 0.0
      %426 = vmatpush.msra.mxu0 0.0
      %427 = vmatpush.msra.mxu0 0.0
      %428 = vmatpush.msra.mxu0 0.0
      %429 = vmatpush.msra.mxu0 0.0
      %430 = vmatpush.msra.mxu0 %v408
      %431 = vmatpush.msra.mxu0 %v407
      %432 = vmatmul.f32.gmra.mxu0 %v411
      %v433 = vpop.f32.mrf.mxu0
      %v434 = vadd.f32 0.0, %v433
      %435 = vmatmul.f32.gmra.mxu0 %v414
      %v436 = vpop.f32.mrf.mxu0
      %v437 = vadd.f32 0.0, %v436
      %438 = vdwg.mxu0
      %439 = vst.msk [vmem:[%s288 + $0xc] sm:$0xff] %vm403, %v434
      %440 = vst.msk [vmem:[%s288 + $0x14] sm:$0xff] %vm403, %v437
      %p441 = scmp.lt.s32.totalorder %s17, 1
      %s442 = scalar_select %p441, %s17, 1
      %s443 = smul.addr %s442, 4
      %s444 = smul.addr %s443, 8
      %s445 = scalar_lea.vmem %s6, %s444
      // Predicated region
      $region45: #{tpu_custom_call.1} parent=43 // pred_check
        %p446 = pneg %p176
      $region46: #{tpu_custom_call.1} parent=43 // pred_check_branch
        %448 = sbr.rel (%p446) target = $region48
      $region47: #{tpu_custom_call.1} parent=43 // pred_region
        _
      $region48: #{tpu_custom_call.1} parent=43 // pred_fallthru
        _
    $region44: #{tpu_custom_call.1} parent=5 // pred_fallthru
      _
    %p449 = scmp.le.s32.totalorder 2, %s12
    // Predicated region
    $region49: #{tpu_custom_call.1} parent=5 // pred_check
      %p450 = pneg %p449
    $region50: #{tpu_custom_call.1} parent=5 // pred_check_branch
      %452 = sbr.rel (%p450) target = $region52
    $region51: #{tpu_custom_call.1} parent=5 // pred_region
      %s453 = ssub.s32 %s12, 2
      // Predicated region
      $region53: #{tpu_custom_call.1} parent=51 // pred_check
        %p454 = pneg %p182
      $region54: #{tpu_custom_call.1} parent=51 // pred_check_branch
        %456 = sbr.rel (%p454) target = $region56
      $region55: #{tpu_custom_call.1} parent=51 // pred_region
        %p457 = scmp.lt.s32.totalorder %s18, 1
        %s458 = scalar_select %p457, %s18, 1
        %s459 = smul.addr %s458, 4
        %s460 = smul.addr %s459, 8
        %s461 = scalar_lea.vmem %s6, %s460
      $region56: #{tpu_custom_call.1} parent=51 // pred_fallthru
        _
    $region52: #{tpu_custom_call.1} parent=5 // pred_fallthru
      _
  $region6: #{tpu_custom_call.1} parent=0 // loop_footer
    %s16 = sadd.s32 1, %s12
  $region7: #{tpu_custom_call.1} parent=0 // loop_footer_branch
    %11 = sbr.rel target = $region3
  $region8: #{tpu_custom_call.1} parent=0 // loop_exit
    _

</llo_original>
